<compile_context>
chip_gen: v7x
topology: tpu7x:2x2x1
jax: 0.10.0
libtpu: 0.0.40
codegen_flags: <defaults>
</compile_context>

<pallas_src>
import functools

import jax
import jax.numpy as jnp
from jax.experimental import pallas as pl
from jax.experimental.pallas import tpu as pltpu


def _mux_kernel_accum_out(x_ref, w_ref, b_ref, o_ref, *, inv_m):
    """K-reduction matmul accumulating directly into the resident f32 output block.

    x_ref: (tm, tk)  lhs tile of reshape(x, (B, M*F))
    w_ref: (tk, tn)  rhs tile of reshape(W, (M*F, F))
    b_ref: (1, tn)   pre-summed bias (sum_m b_m) slice, f32
    o_ref: (tm, tn)  f32 output tile, resident across the K axis
    """
    k = pl.program_id(2)

    @pl.when(k == 0)
    def _():
        o_ref[...] = jnp.zeros_like(o_ref)

    o_ref[...] += jnp.dot(x_ref[...], w_ref[...], preferred_element_type=jnp.float32)

    @pl.when(k == pl.num_programs(2) - 1)
    def _():
        o_ref[...] = (o_ref[...] + b_ref[...]) * inv_m


def _mux_kernel_scratch(x_ref, w_ref, b_ref, o_ref, acc_ref, *, inv_m):
    """Same, but with an f32 VMEM scratch accumulator (for non-f32 output dtypes)."""
    k = pl.program_id(2)

    @pl.when(k == 0)
    def _():
        acc_ref[...] = jnp.zeros_like(acc_ref)

    acc_ref[...] += jnp.dot(x_ref[...], w_ref[...], preferred_element_type=jnp.float32)

    @pl.when(k == pl.num_programs(2) - 1)
    def _():
        o_ref[...] = ((acc_ref[...] + b_ref[...]) * inv_m).astype(o_ref.dtype)


def _pick_tile(dim, max_tile, aligns):
    """Largest legal tile <= max_tile: full dim, else an aligned exact divisor.

    `aligns` is tried in preference order (e.g. (256, 128) to favour the v6e/v7x
    256x256 MXU while keeping 128-multiples — already optimal on v5e — as fallback).
    """
    if dim <= max_tile:
        return dim
    for align in aligns:
        t = (max_tile // align) * align
        while t >= align:
            if dim % t == 0:
                return t
            t -= align
    return dim


def multiplexer_forward(x_bmf, w_mff, b_m1f, *, tm=None, tn=None, tk=None,
                        operand_dtype="auto"):
    """Multiplexer forward (precoder = per-member Linear, mean reduction).

    x_bmf: (B, M, F)  input
    w_mff: (M, F, F)  per-member Linear weight (y = x @ W convention)
    b_m1f: (M, 1, F)  per-member Linear bias
    operand_dtype:
        "auto" (default): bf16 MXU operands when the input is f32 (accumulation stays
                          f32; tolerance ~1e-2), otherwise the input dtype.
        jnp.float32 / None / explicit dtype: override (f32 gives exact parity).
    Returns (B, F) in the input dtype.
    """
    B, M, F = x_bmf.shape
    assert w_mff.shape == (M, F, F) and b_m1f.shape == (M, 1, F)
    K = M * F

    # ---- Operand dtype resolution (bf16 default for f32 inputs) ---------------------
    if isinstance(operand_dtype, str) and operand_dtype == "auto":
        op_dtype = jnp.bfloat16 if x_bmf.dtype == jnp.float32 else x_bmf.dtype
    elif operand_dtype is None:
        op_dtype = x_bmf.dtype
    else:
        op_dtype = jnp.dtype(operand_dtype)

    out_dtype = x_bmf.dtype
    op_bytes = jnp.dtype(op_dtype).itemsize
    out_bytes = jnp.dtype(out_dtype).itemsize

    # Free reshapes (M, F are trailing contiguous dims): no HBM round trip / transpose.
    x2d = x_bmf.reshape(B, K).astype(op_dtype)
    w2d = w_mff.reshape(K, F).astype(op_dtype)
    # Hoisted bias: one (1, F) f32 slab instead of M tiny per-step DMAs.
    b_sum = jnp.sum(b_m1f.reshape(M, F).astype(jnp.float32), axis=0).reshape(1, F)

    # ---- Tile selection --------------------------------------------------------------
    sublane = {4: 8, 2: 16, 1: 32}.get(op_bytes, 8)   # dtype-aware sublane alignment
    tm_cap = 512 if op_bytes <= 2 else 256            # bigger M-tile => fewer weight re-streams
    tk_cap = 2048 if op_bytes <= 2 else 1024          # keep f32 blocks inside v5e budgets

    if tm is None:
        tm = _pick_tile(B, tm_cap, (256, 128, sublane, 8))
    if tk is None:
        tk = _pick_tile(K, tk_cap, (256, 128))
    if tn is None:
        tn = _pick_tile(F, 512, (256, 128))
        # If the parallel grid collapses to 1x1, split the N panel so v7x's second
        # TensorCore has parallel work to shard (free: the weight just splits along F).
        if B <= tm and tn == F and F >= 256 and (F // 2) % 128 == 0:
            tn = F // 2

    # Ragged tiles would accumulate unspecified K padding -> hard error, not silent garbage.
    assert B % tm == 0, f"tm={tm} must divide B={B}"
    assert F % tn == 0, f"tn={tn} must divide F={F}"
    assert K % tk == 0, f"tk={tk} must divide K={K} (= M*F)"

    grid = (B // tm, F // tn, K // tk)
    inv_m = 1.0 / float(M)

    # Deeper weight pipeline for small-batch, multi-K-step (DMA/latency-bound) shapes.
    n_k = grid[2]
    use_extra_w_buf = (n_k > 2) and (tm <= 32) and (tk * tn * op_bytes <= (8 << 20))
    w_bufs = 3 if use_extra_w_buf else 2
    if use_extra_w_buf:
        w_spec = pl.BlockSpec((tk, tn), lambda i, j, k: (k, j),
                              pipeline_mode=pl.Buffered(3))
    else:
        w_spec = pl.BlockSpec((tk, tn), lambda i, j, k: (k, j))

    if out_dtype == jnp.float32:
        kernel = functools.partial(_mux_kernel_accum_out, inv_m=inv_m)
        scratch_shapes = []
        acc_bytes = 0
    else:
        kernel = functools.partial(_mux_kernel_scratch, inv_m=inv_m)
        scratch_shapes = [pltpu.VMEM((tm, tn), jnp.float32)]
        acc_bytes = tm * tn * 4

    # Explicit scoped-VMEM budget from the actual (double/triple-buffered) blocks + headroom.
    vmem_needed = (2 * tm * tk * op_bytes            # x blocks
                   + w_bufs * tk * tn * op_bytes     # weight blocks
                   + 2 * max(tn, 128) * 4            # bias blocks (f32)
                   + 2 * tm * tn * out_bytes         # output blocks
                   + acc_bytes)                      # f32 scratch accumulator
    vmem_limit = min(128 << 20, max(int(vmem_needed * 1.25) + (4 << 20), 32 << 20))

    cost = pl.CostEstimate(
        flops=2 * B * K * F + 2 * B * F,
        transcendentals=0,
        bytes_accessed=B * K * op_bytes + K * F * op_bytes + F * 4 + B * F * out_bytes,
    )

    return pl.pallas_call(
        kernel,
        out_shape=jax.ShapeDtypeStruct((B, F), out_dtype),
        grid_spec=pltpu.PrefetchScalarGridSpec(
            num_scalar_prefetch=0,
            grid=grid,
            in_specs=[
                pl.BlockSpec((tm, tk), lambda i, j, k: (i, k)),  # x tile
                w_spec,                                          # weight tile
                pl.BlockSpec((1, tn), lambda i, j, k: (0, j)),   # pre-summed bias slice
            ],
            out_specs=pl.BlockSpec((tm, tn), lambda i, j, k: (i, j)),
            scratch_shapes=scratch_shapes,
        ),
        compiler_params=pltpu.CompilerParams(
            # B/F tiles are independent (megacore-shardable on v7x); K is the reduction.
            dimension_semantics=("parallel", "parallel", "arbitrary"),
            vmem_limit_bytes=vmem_limit,
        ),
        cost_estimate=cost,
    )(x2d, w2d, b_sum)


if __name__ == "__main__":
    B, M, F = 8, 4, 128  # batch, num_members, features (F lane-aligned to 128)

    key = jax.random.PRNGKey(0)
    kx, kw, kb = jax.random.split(key, 3)

    x = jax.random.normal(kx, (B, M, F), dtype=jnp.float32)
    # Deterministic per-member Linear params (ParallelModel precoder).
    w = jax.random.normal(kw, (M, F, F), dtype=jnp.float32) * (1.0 / jnp.sqrt(F))
    b = jax.random.normal(kb, (M, 1, F), dtype=jnp.float32) * 0.01

    # Pure-JAX reference: per-member linear then mean over members.
    ref = jnp.mean(jnp.einsum("bmf,mfg->bmg", x, w) + b.transpose(1, 0, 2), axis=1)

    # 1) Default path: bf16 MXU operands, f32 accumulation, f32 output.
    out_default = jax.block_until_ready(multiplexer_forward(x, w, b))
    assert out_default.shape == (B, F)
    assert jnp.allclose(out_default, ref, atol=2e-2, rtol=2e-2), "bf16-operand path mismatch"

    # 2) Full-f32 parity path; explicit tk exercises the multi-step K accumulation.
    out_f32 = jax.block_until_ready(
        multiplexer_forward(x, w, b, operand_dtype=jnp.float32, tk=256))
    assert jnp.allclose(out_f32, ref, atol=1e-4, rtol=1e-4), "f32 path mismatch"

    # 3) bf16 input/output (scratch-accumulator kernel path).
    out_bf16 = jax.block_until_ready(multiplexer_forward(x.astype(jnp.bfloat16), w, b))
    assert jnp.allclose(out_bf16.astype(jnp.float32), ref, atol=5e-2, rtol=5e-2), \
        "bf16 output path mismatch"

    print("KERNEL_OK")
</pallas_src>

<mosaic_0001>
module attributes {stable_mosaic.version = 11 : i64} {
  func.func @_mux_kernel_accum_out(%arg0: i32, %arg1: i32, %arg2: i32, %arg3: memref<8x512xbf16, #tpu.memory_space<vmem>>, %arg4: memref<512x128xbf16, #tpu.memory_space<vmem>>, %arg5: memref<1x128xf32, #tpu.memory_space<vmem>>, %arg6: memref<8x128xf32, #tpu.memory_space<vmem>>) attributes {dimension_semantics = [#tpu.dimension_semantics<parallel>, #tpu.dimension_semantics<parallel>, #tpu.dimension_semantics<arbitrary>], iteration_bounds = array<i64: 1, 1, 1>, scalar_prefetch = 0 : i64, scratch_operands = 0 : i64, tpu.core_type = #tpu.core_type<tc>, window_params = [{transform_indices = @transform_0, window_bounds = array<i64: 8, 512>}, {transform_indices = @transform_1, window_bounds = array<i64: 512, 128>}, {transform_indices = @transform_2, window_bounds = array<i64: 1, 128>}, {transform_indices = @transform_3, window_bounds = array<i64: 8, 128>}]} {
    %c0_i32 = arith.constant 0 : i32
    %0 = arith.cmpi eq, %arg2, %c0_i32 : i32
    %1 = arith.extui %0 : i1 to i32
    %c0_i32_0 = arith.constant 0 : i32
    %2 = arith.cmpi ne, %1, %c0_i32_0 : i32
    scf.if %2 {
      %cst_10 = arith.constant 0.000000e+00 : f32
      %12 = vector.broadcast %cst_10 : f32 to vector<8x128xf32>
      %c0_11 = arith.constant 0 : index
      %c0_12 = arith.constant 0 : index
      %13 = vector.load %arg6[%c0_11, %c0_12] : memref<8x128xf32, #tpu.memory_space<vmem>>, vector<8x128xf32>
      tpu.vector_store %arg6[%c0_11, %c0_12], %12 {strides = array<i32>} : memref<8x128xf32, #tpu.memory_space<vmem>>, vector<8x128xf32>,
    } else {
    }
    %c0 = arith.constant 0 : index
    %c0_1 = arith.constant 0 : index
    %3 = vector.load %arg6[%c0, %c0_1] : memref<8x128xf32, #tpu.memory_space<vmem>>, vector<8x128xf32>
    %c0_2 = arith.constant 0 : index
    %c0_3 = arith.constant 0 : index
    %4 = vector.load %arg3[%c0_2, %c0_3] : memref<8x512xbf16, #tpu.memory_space<vmem>>, vector<8x512xbf16>
    %c0_4 = arith.constant 0 : index
    %c0_5 = arith.constant 0 : index
    %5 = vector.load %arg4[%c0_4, %c0_5] : memref<512x128xbf16, #tpu.memory_space<vmem>>, vector<512x128xbf16>
    %cst = arith.constant dense<0.000000e+00> : vector<8x128xf32>
    %6 = tpu.matmul %4, %5, %cst {dimension_numbers = #tpu.dot_dimension_numbers<[1], [0], [0], [1], [0, 0, 1, 1], [], []>} : vector<8x512xbf16>, vector<512x128xbf16>, vector<8x128xf32> -> vector<8x128xf32>
    %7 = arith.addf %3, %6 : vector<8x128xf32>
    %c0_6 = arith.constant 0 : index
    %c0_7 = arith.constant 0 : index
    %8 = vector.load %arg6[%c0_6, %c0_7] : memref<8x128xf32, #tpu.memory_space<vmem>>, vector<8x128xf32>
    tpu.vector_store %arg6[%c0_6, %c0_7], %7 {strides = array<i32>} : memref<8x128xf32, #tpu.memory_space<vmem>>, vector<8x128xf32>,
    %c0_i32_8 = arith.constant 0 : i32
    %9 = arith.cmpi eq, %arg2, %c0_i32_8 : i32
    %10 = arith.extui %9 : i1 to i32
    %c0_i32_9 = arith.constant 0 : i32
    %11 = arith.cmpi ne, %10, %c0_i32_9 : i32
    scf.if %11 {
      %c0_10 = arith.constant 0 : index
      %c0_11 = arith.constant 0 : index
      %12 = vector.load %arg6[%c0_10, %c0_11] : memref<8x128xf32, #tpu.memory_space<vmem>>, vector<8x128xf32>
      %c0_12 = arith.constant 0 : index
      %c0_13 = arith.constant 0 : index
      %13 = vector.load %arg5[%c0_12, %c0_13] : memref<1x128xf32, #tpu.memory_space<vmem>>, vector<1x128xf32>
      %14 = vector.broadcast %13 : vector<1x128xf32> to vector<8x128xf32>
      %15 = arith.addf %12, %14 : vector<8x128xf32>
      %cst_14 = arith.constant 2.500000e-01 : f32
      %16 = vector.broadcast %cst_14 : f32 to vector<8x128xf32>
      %17 = arith.mulf %15, %16 : vector<8x128xf32>
      %c0_15 = arith.constant 0 : index
      %c0_16 = arith.constant 0 : index
      %18 = vector.load %arg6[%c0_15, %c0_16] : memref<8x128xf32, #tpu.memory_space<vmem>>, vector<8x128xf32>
      tpu.vector_store %arg6[%c0_15, %c0_16], %17 {strides = array<i32>} : memref<8x128xf32, #tpu.memory_space<vmem>>, vector<8x128xf32>,
    } else {
    }
    return
  }
  func.func @transform_0(%arg0: i32, %arg1: i32, %arg2: i32) -> (i32, i32) {
    %c0_i32 = arith.constant 0 : i32
    return %arg0, %arg2 : i32, i32
  }
  func.func @transform_1(%arg0: i32, %arg1: i32, %arg2: i32) -> (i32, i32) {
    %c0_i32 = arith.constant 0 : i32
    return %arg2, %arg1 : i32, i32
  }
  func.func @transform_2(%arg0: i32, %arg1: i32, %arg2: i32) -> (i32, i32) {
    %c0_i32 = arith.constant 0 : i32
    %c0_i32_0 = arith.constant 0 : i32
    return %c0_i32, %arg1 : i32, i32
  }
  func.func @transform_3(%arg0: i32, %arg1: i32, %arg2: i32) -> (i32, i32) {
    %c0_i32 = arith.constant 0 : i32
    return %arg0, %arg1 : i32, i32
  }
}

</mosaic_0001>

<llo_original>
// kernel: tpu_custom_call.1
$region0: #{tpu_custom_call.1}
  #allocation0 [shape = 'u32[]', space=smem, size = 0x4, offset = 0x4, fixed_abs, tag = 'smem constant byte address 0x4 - core index']
  #allocation1 [shape = 'u32[144,128]{1,0:T(1,128)}', space=vmem, size = 0x12000, scoped, tag = 'internal scratch']
  %s0 = inlined_call_operand.hbm [shape: bf16[8,512], index: 0, kind: input, shape index: {}]
  %s1 = inlined_call_operand.hbm [shape: bf16[512,128], index: 1, kind: input, shape index: {}]
  %s2 = inlined_call_operand.vmem [shape: f32[1,128], index: 2, kind: input, shape index: {}]
  %s3 = inlined_call_operand.hbm [shape: f32[8,128], index: 3, kind: output, shape index: {}]
  %s4 = sld [smem:[#allocation0]]
  $region38: #{tpu_custom_call.1} parent=0
    _
  %s6 = ssub.s32 1, %s4
  %s7 = scalar_select 0, %s6, %s4
  $region1: #{tpu_custom_call.1} parent=0
    #allocation2 [shape = 'u8[8192]{0}', space=vmem, size = 0x2000, scoped, tag = 'input window, operand 0, single buffered']
    #allocation3 [shape = 's32[1]{0}', space=sflag, size = 0x4, scoped, tag = 'scoped memory for tpu_custom_call.1']
    #allocation4 [shape = 's32[1]{0}', space=sflag, size = 0x4, scoped, tag = 'scoped memory for tpu_custom_call.1']
    #allocation5 [shape = 'u8[131072]{0}', space=vmem, size = 0x20000, scoped, tag = 'input window, operand 1, single buffered']
    #allocation6 [shape = 's32[1]{0}', space=sflag, size = 0x4, scoped, tag = 'scoped memory for tpu_custom_call.1']
    #allocation7 [shape = 'u8[4096]{0}', space=vmem, size = 0x1000, scoped, tag = 'output window, operand 0, single buffered']
    %8 = vsyncpa [#allocation3], 0
    %9 = vsyncpa [#allocation6], 0
    %10 = vsyncpa [#allocation4], 0
    // Predicated region
    $region2: #{tpu_custom_call.1} parent=1 // pred_check
      _
    $region3: #{tpu_custom_call.1} parent=1 // pred_check_branch
      %12 = sbr.rel (0) target = $region5
    $region4: #{tpu_custom_call.1} parent=1 // pred_region
      %s14 = ssub.s32 256, 256
      %15 = vsyncadd [#allocation3], %s14
      %s17 = sshll.u32 [#allocation2], 4
      %s18 = int_to_ptr.vmem [resolvable:$true] %s17
      %20 = dma.hbm_to_vmem [thread:$0]  %s0, 256, %s18, [#allocation3]
    $region5: #{tpu_custom_call.1} parent=1 // pred_fallthru
      _
    // Predicated region
    $region6: #{tpu_custom_call.1} parent=1 // pred_check
      _
    $region7: #{tpu_custom_call.1} parent=1 // pred_check_branch
      %22 = sbr.rel (0) target = $region9
    $region8: #{tpu_custom_call.1} parent=1 // pred_region
      %s24 = ssub.s32 4096, 4096
      %25 = vsyncadd [#allocation6], %s24
      %s26 = sshll.u32 [#allocation5], 4
      %s27 = int_to_ptr.vmem [resolvable:$true] %s26
      %32 = dma.hbm_to_vmem [thread:$0]  %s1, 4096, %s27, [#allocation6], 64, 64, 4
    $region9: #{tpu_custom_call.1} parent=1 // pred_fallthru
      _
    // Predicated region
    $region10: #{tpu_custom_call.1} parent=1 // pred_check
      _
    $region11: #{tpu_custom_call.1} parent=1 // pred_check_branch
      %34 = sbr.rel (0) target = $region13
    $region12: #{tpu_custom_call.1} parent=1 // pred_region
      _
    $region13: #{tpu_custom_call.1} parent=1 // pred_fallthru
      _
    // Predicated region
    $region14: #{tpu_custom_call.1} parent=1 // pred_check
      _
    $region15: #{tpu_custom_call.1} parent=1 // pred_check_branch
      %36 = sbr.rel (0) target = $region17
    $region16: #{tpu_custom_call.1} parent=1 // pred_region
      %37 = dma.done [#allocation3], 256
    $region17: #{tpu_custom_call.1} parent=1 // pred_fallthru
      _
    // Predicated region
    $region18: #{tpu_custom_call.1} parent=1 // pred_check
      _
    $region19: #{tpu_custom_call.1} parent=1 // pred_check_branch
      %39 = sbr.rel (0) target = $region21
    $region20: #{tpu_custom_call.1} parent=1 // pred_region
      %40 = dma.done [#allocation6], 4096
    $region21: #{tpu_custom_call.1} parent=1 // pred_fallthru
      _
    %p42 = scmp.eq.s32.totalorder 0, 0
    // Predicated region
    $region22: #{tpu_custom_call.1} parent=1 // pred_check
      %p43 = pneg %p42
    $region23: #{tpu_custom_call.1} parent=1 // pred_check_branch
      %45 = sbr.rel (%p43) target = $region25
    $region24: #{tpu_custom_call.1} parent=1 // pred_region
      %46 = vst [vmem:[#allocation7] sm:$0xff] 0.0
    $region25: #{tpu_custom_call.1} parent=1 // pred_fallthru
      _
    %v47 = vld [vmem:[#allocation7] sm:$0xff]
    %v48 = vld [vmem:[#allocation2] sm:$0xff]
    %v49 = vld [vmem:[#allocation2 + $0x8] sm:$0xff]
    %v50 = vld [vmem:[#allocation5] sm:$0xf]
    %v51 = vld [vmem:[#allocation5 + $0x4] sm:$0xf]
    %v52 = vld [vmem:[#allocation5 + $0x8] sm:$0xf]
    %v53 = vld [vmem:[#allocation5 + $0xc] sm:$0xf]
    %v54 = vld [vmem:[#allocation5 + $0x10] sm:$0xf]
    %v55 = vld [vmem:[#allocation5 + $0x14] sm:$0xf]
    %v56 = vld [vmem:[#allocation5 + $0x18] sm:$0xf]
    %v57 = vld [vmem:[#allocation5 + $0x1c] sm:$0xf]
    %v58 = vld [vmem:[#allocation5 + $0x20] sm:$0xf]
    %v59 = vld [vmem:[#allocation5 + $0x24] sm:$0xf]
    %v60 = vld [vmem:[#allocation5 + $0x28] sm:$0xf]
    %v61 = vld [vmem:[#allocation5 + $0x2c] sm:$0xf]
    %v62 = vld [vmem:[#allocation5 + $0x30] sm:$0xf]
    %v63 = vld [vmem:[#allocation5 + $0x34] sm:$0xf]
    %v64 = vld [vmem:[#allocation5 + $0x38] sm:$0xf]
    %v65 = vld [vmem:[#allocation5 + $0x3c] sm:$0xf]
    %v66 = vld [vmem:[#allocation5 + $0x40] sm:$0xf]
    %v67 = vld [vmem:[#allocation5 + $0x44] sm:$0xf]
    %v68 = vld [vmem:[#allocation5 + $0x48] sm:$0xf]
    %v69 = vld [vmem:[#allocation5 + $0x4c] sm:$0xf]
    %v70 = vld [vmem:[#allocation5 + $0x50] sm:$0xf]
    %v71 = vld [vmem:[#allocation5 + $0x54] sm:$0xf]
    %v72 = vld [vmem:[#allocation5 + $0x58] sm:$0xf]
    %v73 = vld [vmem:[#allocation5 + $0x5c] sm:$0xf]
    %v74 = vld [vmem:[#allocation5 + $0x60] sm:$0xf]
    %v75 = vld [vmem:[#allocation5 + $0x64] sm:$0xf]
    %v76 = vld [vmem:[#allocation5 + $0x68] sm:$0xf]
    %v77 = vld [vmem:[#allocation5 + $0x6c] sm:$0xf]
    %v78 = vld [vmem:[#allocation5 + $0x70] sm:$0xf]
    %v79 = vld [vmem:[#allocation5 + $0x74] sm:$0xf]
    %v80 = vld [vmem:[#allocation5 + $0x78] sm:$0xf]
    %v81 = vld [vmem:[#allocation5 + $0x7c] sm:$0xf]
    %v82 = vld [vmem:[#allocation5 + $0x80] sm:$0xf]
    %v83 = vld [vmem:[#allocation5 + $0x84] sm:$0xf]
    %v84 = vld [vmem:[#allocation5 + $0x88] sm:$0xf]
    %v85 = vld [vmem:[#allocation5 + $0x8c] sm:$0xf]
    %v86 = vld [vmem:[#allocation5 + $0x90] sm:$0xf]
    %v87 = vld [vmem:[#allocation5 + $0x94] sm:$0xf]
    %v88 = vld [vmem:[#allocation5 + $0x98] sm:$0xf]
    %v89 = vld [vmem:[#allocation5 + $0x9c] sm:$0xf]
    %v90 = vld [vmem:[#allocation5 + $0xa0] sm:$0xf]
    %v91 = vld [vmem:[#allocation5 + $0xa4] sm:$0xf]
    %v92 = vld [vmem:[#allocation5 + $0xa8] sm:$0xf]
    %v93 = vld [vmem:[#allocation5 + $0xac] sm:$0xf]
    %v94 = vld [vmem:[#allocation5 + $0xb0] sm:$0xf]
    %v95 = vld [vmem:[#allocation5 + $0xb4] sm:$0xf]
    %v96 = vld [vmem:[#allocation5 + $0xb8] sm:$0xf]
    %v97 = vld [vmem:[#allocation5 + $0xbc] sm:$0xf]
    %v98 = vld [vmem:[#allocation5 + $0xc0] sm:$0xf]
    %v99 = vld [vmem:[#allocation5 + $0xc4] sm:$0xf]
    %v100 = vld [vmem:[#allocation5 + $0xc8] sm:$0xf]
    %v101 = vld [vmem:[#allocation5 + $0xcc] sm:$0xf]
    %v102 = vld [vmem:[#allocation5 + $0xd0] sm:$0xf]
    %v103 = vld [vmem:[#allocation5 + $0xd4] sm:$0xf]
    %v104 = vld [vmem:[#allocation5 + $0xd8] sm:$0xf]
    %v105 = vld [vmem:[#allocation5 + $0xdc] sm:$0xf]
    %v106 = vld [vmem:[#allocation5 + $0xe0] sm:$0xf]
    %v107 = vld [vmem:[#allocation5 + $0xe4] sm:$0xf]
    %v108 = vld [vmem:[#allocation5 + $0xe8] sm:$0xf]
    %v109 = vld [vmem:[#allocation5 + $0xec] sm:$0xf]
    %v110 = vld [vmem:[#allocation5 + $0xf0] sm:$0xf]
    %v111 = vld [vmem:[#allocation5 + $0xf4] sm:$0xf]
    %v112 = vld [vmem:[#allocation5 + $0xf8] sm:$0xf]
    %v113 = vld [vmem:[#allocation5 + $0xfc] sm:$0xf]
    %v116 = vunpack.c.l.b16 %v48
    %v117 = vunpack.c.h.b16 %v48
    %v118 = vunpack.c.l.b16 %v49
    %v119 = vunpack.c.h.b16 %v49
    %v120 = vpack.c.b16 %v116, %v116
    %v121 = vpack.c.b16 %v117, %v117
    %v122 = vpack.c.b16 %v118, %v118
    %v123 = vpack.c.b16 %v119, %v119
    %v192 = vunpack.c.l.b16 %v50
    %v193 = vunpack.c.l.b16 %v51
    %v194 = vunpack.c.l.b16 %v52
    %v195 = vunpack.c.l.b16 %v53
    %v196 = vunpack.c.l.b16 %v54
    %v197 = vunpack.c.l.b16 %v55
    %v198 = vunpack.c.l.b16 %v56
    %v199 = vunpack.c.l.b16 %v57
    %v200 = vunpack.c.l.b16 %v58
    %v201 = vunpack.c.l.b16 %v59
    %v202 = vunpack.c.l.b16 %v60
    %v203 = vunpack.c.l.b16 %v61
    %v204 = vunpack.c.l.b16 %v62
    %v205 = vunpack.c.l.b16 %v63
    %v206 = vunpack.c.l.b16 %v64
    %v207 = vunpack.c.l.b16 %v65
    %v208 = vunpack.c.l.b16 %v66
    %v209 = vunpack.c.l.b16 %v67
    %v210 = vunpack.c.l.b16 %v68
    %v211 = vunpack.c.l.b16 %v69
    %v212 = vunpack.c.l.b16 %v70
    %v213 = vunpack.c.l.b16 %v71
    %v214 = vunpack.c.l.b16 %v72
    %v215 = vunpack.c.l.b16 %v73
    %v216 = vunpack.c.l.b16 %v74
    %v217 = vunpack.c.l.b16 %v75
    %v218 = vunpack.c.l.b16 %v76
    %v219 = vunpack.c.l.b16 %v77
    %v220 = vunpack.c.l.b16 %v78
    %v221 = vunpack.c.l.b16 %v79
    %v222 = vunpack.c.l.b16 %v80
    %v223 = vunpack.c.l.b16 %v81
    %v224 = vunpack.c.l.b16 %v82
    %v225 = vunpack.c.l.b16 %v83
    %v226 = vunpack.c.l.b16 %v84
    %v227 = vunpack.c.l.b16 %v85
    %v228 = vunpack.c.l.b16 %v86
    %v229 = vunpack.c.l.b16 %v87
    %v230 = vunpack.c.l.b16 %v88
    %v231 = vunpack.c.l.b16 %v89
    %v232 = vunpack.c.l.b16 %v90
    %v233 = vunpack.c.l.b16 %v91
    %v234 = vunpack.c.l.b16 %v92
    %v235 = vunpack.c.l.b16 %v93
    %v236 = vunpack.c.l.b16 %v94
    %v237 = vunpack.c.l.b16 %v95
    %v238 = vunpack.c.l.b16 %v96
    %v239 = vunpack.c.l.b16 %v97
    %v240 = vunpack.c.l.b16 %v98
    %v241 = vunpack.c.l.b16 %v99
    %v242 = vunpack.c.l.b16 %v100
    %v243 = vunpack.c.l.b16 %v101
    %v244 = vunpack.c.l.b16 %v102
    %v245 = vunpack.c.l.b16 %v103
    %v246 = vunpack.c.l.b16 %v104
    %v247 = vunpack.c.l.b16 %v105
    %v248 = vunpack.c.l.b16 %v106
    %v249 = vunpack.c.l.b16 %v107
    %v250 = vunpack.c.l.b16 %v108
    %v251 = vunpack.c.l.b16 %v109
    %v252 = vunpack.c.l.b16 %v110
    %v253 = vunpack.c.l.b16 %v111
    %v254 = vunpack.c.l.b16 %v112
    %v255 = vunpack.c.l.b16 %v113
    %v256 = vpack.c.b16 %v193, %v192
    %v257 = vpack.c.b16 %v195, %v194
    %v258 = vpack.c.b16 %v197, %v196
    %v259 = vpack.c.b16 %v199, %v198
    %v260 = vpack.c.b16 %v201, %v200
    %v261 = vpack.c.b16 %v203, %v202
    %v262 = vpack.c.b16 %v205, %v204
    %v263 = vpack.c.b16 %v207, %v206
    %v264 = vpack.c.b16 %v209, %v208
    %v265 = vpack.c.b16 %v211, %v210
    %v266 = vpack.c.b16 %v213, %v212
    %v267 = vpack.c.b16 %v215, %v214
    %v268 = vpack.c.b16 %v217, %v216
    %v269 = vpack.c.b16 %v219, %v218
    %v270 = vpack.c.b16 %v221, %v220
    %v271 = vpack.c.b16 %v223, %v222
    %v272 = vpack.c.b16 %v225, %v224
    %v273 = vpack.c.b16 %v227, %v226
    %v274 = vpack.c.b16 %v229, %v228
    %v275 = vpack.c.b16 %v231, %v230
    %v276 = vpack.c.b16 %v233, %v232
    %v277 = vpack.c.b16 %v235, %v234
    %v278 = vpack.c.b16 %v237, %v236
    %v279 = vpack.c.b16 %v239, %v238
    %v280 = vpack.c.b16 %v241, %v240
    %v281 = vpack.c.b16 %v243, %v242
    %v282 = vpack.c.b16 %v245, %v244
    %v283 = vpack.c.b16 %v247, %v246
    %v284 = vpack.c.b16 %v249, %v248
    %v285 = vpack.c.b16 %v251, %v250
    %v286 = vpack.c.b16 %v253, %v252
    %v287 = vpack.c.b16 %v255, %v254
    %320 = vmatprep.subr.bf16.mxu0 0
    %321 = vmatpush1.bf16.msra.mxu0 %v256
    %322 = vmatprep.subr.bf16.mxu0 0
    %323 = vmatpush1.bf16.msra.mxu0 %v257
    %324 = vmatprep.subr.bf16.mxu0 0
    %325 = vmatpush1.bf16.msra.mxu0 %v258
    %326 = vmatprep.subr.bf16.mxu0 0
    %327 = vmatpush1.bf16.msra.mxu0 %v259
    %328 = vmatprep.subr.bf16.mxu0 0
    %329 = vmatpush1.bf16.msra.mxu0 %v260
    %330 = vmatprep.subr.bf16.mxu0 0
    %331 = vmatpush1.bf16.msra.mxu0 %v261
    %332 = vmatprep.subr.bf16.mxu0 0
    %333 = vmatpush1.bf16.msra.mxu0 %v262
    %334 = vmatprep.subr.bf16.mxu0 0
    %335 = vmatpush1.bf16.msra.mxu0 %v263
    %336 = vmatprep.subr.bf16.mxu0 0
    %337 = vmatpush1.bf16.msra.mxu0 %v264
    %338 = vmatprep.subr.bf16.mxu0 0
    %339 = vmatpush1.bf16.msra.mxu0 %v265
    %340 = vmatprep.subr.bf16.mxu0 0
    %341 = vmatpush1.bf16.msra.mxu0 %v266
    %342 = vmatprep.subr.bf16.mxu0 0
    %343 = vmatpush1.bf16.msra.mxu0 %v267
    %344 = vmatprep.subr.bf16.mxu0 0
    %345 = vmatpush1.bf16.msra.mxu0 %v268
    %346 = vmatprep.subr.bf16.mxu0 0
    %347 = vmatpush1.bf16.msra.mxu0 %v269
    %348 = vmatprep.subr.bf16.mxu0 0
    %349 = vmatpush1.bf16.msra.mxu0 %v270
    %350 = vmatprep.subr.bf16.mxu0 0
    %351 = vmatpush1.bf16.msra.mxu0 %v271
    %352 = vmatprep.mubr.bf16.mxu0 %v121
    %353 = vmatmul.mubr.bf16.gmra.mrb[0].mxu0 %v120
    %v354 = vpop.f32.mrb[0].mxu0
    %v355 = vadd.f32 0.0, %v354
    %v356 = vpop.f32.mrb[0].mxu0
    %v357 = vpop.f32.mrb[0].mxu0
    %v358 = vpop.f32.mrb[0].mxu0
    %359 = vdwg.mxu0
    %360 = vmatprep.subr.bf16.mxu0 0
    %361 = vmatpush1.bf16.msra.mxu0 %v272
    %362 = vmatprep.subr.bf16.mxu0 0
    %363 = vmatpush1.bf16.msra.mxu0 %v273
    %364 = vmatprep.subr.bf16.mxu0 0
    %365 = vmatpush1.bf16.msra.mxu0 %v274
    %366 = vmatprep.subr.bf16.mxu0 0
    %367 = vmatpush1.bf16.msra.mxu0 %v275
    %368 = vmatprep.subr.bf16.mxu0 0
    %369 = vmatpush1.bf16.msra.mxu0 %v276
    %370 = vmatprep.subr.bf16.mxu0 0
    %371 = vmatpush1.bf16.msra.mxu0 %v277
    %372 = vmatprep.subr.bf16.mxu0 0
    %373 = vmatpush1.bf16.msra.mxu0 %v278
    %374 = vmatprep.subr.bf16.mxu0 0
    %375 = vmatpush1.bf16.msra.mxu0 %v279
    %376 = vmatprep.subr.bf16.mxu0 0
    %377 = vmatpush1.bf16.msra.mxu0 %v280
    %378 = vmatprep.subr.bf16.mxu0 0
    %379 = vmatpush1.bf16.msra.mxu0 %v281
    %380 = vmatprep.subr.bf16.mxu0 0
    %381 = vmatpush1.bf16.msra.mxu0 %v282
    %382 = vmatprep.subr.bf16.mxu0 0
    %383 = vmatpush1.bf16.msra.mxu0 %v283
    %384 = vmatprep.subr.bf16.mxu0 0
    %385 = vmatpush1.bf16.msra.mxu0 %v284
    %386 = vmatprep.subr.bf16.mxu0 0
    %387 = vmatpush1.bf16.msra.mxu0 %v285
    %388 = vmatprep.subr.bf16.mxu0 0
    %389 = vmatpush1.bf16.msra.mxu0 %v286
    %390 = vmatprep.subr.bf16.mxu0 0
    %391 = vmatpush1.bf16.msra.mxu0 %v287
    %392 = vmatprep.mubr.bf16.mxu0 %v123
    %393 = vmatmul.mubr.bf16.gmra.mrb[0].mxu0 %v122
    %v394 = vpop.f32.mrb[0].mxu0
    %v395 = vadd.f32 %v355, %v394
    %v396 = vpop.f32.mrb[0].mxu0
    %v397 = vpop.f32.mrb[0].mxu0
    %v398 = vpop.f32.mrb[0].mxu0
    %399 = vdwg.mxu0
    %v400 = vadd.f32 %v47, %v395
    %401 = vst [vmem:[#allocation7] sm:$0xff] %v400
    // Predicated region
    $region26: #{tpu_custom_call.1} parent=1 // pred_check
      %p402 = pneg %p42
    $region27: #{tpu_custom_call.1} parent=1 // pred_check_branch
      %404 = sbr.rel (%p402) target = $region29
    $region28: #{tpu_custom_call.1} parent=1 // pred_region
      %v405 = vld [vmem:[#allocation7] sm:$0xff]
      %v406 = vld [vmem:[%s2] sm:$0x1]
      %v408 = vlaneseq
      %v409 = vshrl.u32 %v408, 7
      %v410 = vsub.s32 0, %v409
      %v411 = vrot.slane %v406, %v410
      %v413 = vadd.f32 %v405, %v411
      %v414 = vmul.f32 %v413, 0.25
      %415 = vst [vmem:[#allocation7] sm:$0xff] %v414
    $region29: #{tpu_custom_call.1} parent=1 // pred_fallthru
      _
    // Predicated region
    $region30: #{tpu_custom_call.1} parent=1 // pred_check
      _
    $region31: #{tpu_custom_call.1} parent=1 // pred_check_branch
      %417 = sbr.rel (0) target = $region33
    $region32: #{tpu_custom_call.1} parent=1 // pred_region
      %s419 = ssub.s32 128, 128
      %420 = vsyncadd [#allocation4], %s419
      %s422 = sshll.u32 [#allocation7], 4
      %s423 = int_to_ptr.vmem [resolvable:$true] %s422
      %425 = dma.vmem_to_hbm [thread:$0]  %s423, 128, %s3, [#allocation4]
    $region33: #{tpu_custom_call.1} parent=1 // pred_fallthru
      _
    // Predicated region
    $region34: #{tpu_custom_call.1} parent=1 // pred_check
      _
    $region35: #{tpu_custom_call.1} parent=1 // pred_check_branch
      %427 = sbr.rel (0) target = $region37
    $region36: #{tpu_custom_call.1} parent=1 // pred_region
      %428 = dma.done [#allocation4], 128
    $region37: #{tpu_custom_call.1} parent=1 // pred_fallthru
      _
    %429 = vsyncpa [#allocation3], 1
    %430 = vsyncpa [#allocation6], 1
    %431 = vsyncpa [#allocation4], 1

</llo_original>
